<compile_context>
chip_gen: v7x
topology: tpu7x:2x2x1
jax: 0.10.0
libtpu: 0.0.40
codegen_flags: <defaults>
</compile_context>

<pallas_src>
from functools import partial

import jax
import jax.numpy as jnp
from jax import lax
from jax.experimental import pallas as pl
from jax.experimental.pallas import tpu as pltpu


def _loc_eval_kernel(h_ref, w_ref, b_ref, out_ref):
    # mean = tanh(h @ W^T + b); in eval mode l_t == clamp(mean) == mean, so one
    # output slab, no clip, no PRNG/seed DMA.
    logits = lax.dot_general(
        h_ref[...], w_ref[...],
        dimension_numbers=(((1,), (1,)), ((), ())),   # contract D_in, no transpose op
        preferred_element_type=jnp.float32,
    ) + b_ref[...]
    out_ref[...] = jnp.tanh(logits).astype(out_ref.dtype)


def _loc_train_kernel(h_ref, w_ref, b_ref, noise_ref, out_ref, *, std):
    logits = lax.dot_general(
        h_ref[...], w_ref[...],
        dimension_numbers=(((1,), (1,)), ((), ())),
        preferred_element_type=jnp.float32,
    ) + b_ref[...]
    mean = jnp.tanh(logits)
    l_t = jnp.clip(mean + jnp.float32(std) * noise_ref[...], -1.0, 1.0)
    # Single packed output [mean | l_t] -> one store / one writeback DMA.
    out_ref[...] = jnp.concatenate([mean, l_t], axis=-1).astype(out_ref.dtype)


def prepare_location_params(weight, bias):
    """One-time parameter prep (call at init, NOT per forward step)."""
    w = jnp.asarray(weight, jnp.float32)                # [D_out, D_in] as-is
    b = jnp.asarray(bias, jnp.float32).reshape(1, -1)   # [1, D_out]
    return w, b


def location_network_forward(h_t, w, b, *, std, training=False, rng=None, bm=None):
    """Pallas implementation of LocationNetwork.forward.

    h_t: [B, D_in] float32; w: [D_out, D_in]; b: [1, D_out] (from prepare_location_params).
    Returns (mean, l_t), each [B, D_out] float32.
    """
    B, d_in = h_t.shape
    d_out = w.shape[0]
    if bm is None:
        bm = B if B <= 128 else 128  # f32 sublane-friendly; keep well under VMEM on v7x
    grid = (pl.cdiv(B, bm),)

    h_spec = pl.BlockSpec((bm, d_in), lambda i: (i, 0))
    w_spec = pl.BlockSpec((d_out, d_in), lambda i: (0, 0))
    b_spec = pl.BlockSpec((1, d_out), lambda i: (0, 0))
    cparams = pltpu.CompilerParams(dimension_semantics=("parallel",))

    if not training:
        mean = pl.pallas_call(
            _loc_eval_kernel,
            grid=grid,
            in_specs=[h_spec, w_spec, b_spec],
            out_specs=pl.BlockSpec((bm, d_out), lambda i: (i, 0)),
            out_shape=jax.ShapeDtypeStruct((B, d_out), jnp.float32),
            compiler_params=cparams,
        )(h_t, w, b)
        return mean, mean  # tanh already in (-1, 1): clamp is the identity

    if rng is None:
        rng = jax.random.PRNGKey(0)
    # Counter-based PRNG keyed per call -> distinct noise each timestep.
    noise = jax.random.normal(rng, (B, d_out), dtype=jnp.float32)

    packed = pl.pallas_call(
        partial(_loc_train_kernel, std=float(std)),
        grid=grid,
        in_specs=[h_spec, w_spec, b_spec,
                  pl.BlockSpec((bm, d_out), lambda i: (i, 0))],
        out_specs=pl.BlockSpec((bm, 2 * d_out), lambda i: (i, 0)),
        out_shape=jax.ShapeDtypeStruct((B, 2 * d_out), jnp.float32),
        compiler_params=cparams,
    )(h_t, w, b, noise)
    return packed[:, :d_out], packed[:, d_out:]


if __name__ == "__main__":
    # Shapes implied by the module: h_t is the RNN hidden state, output is a
    # 2-D glimpse location.
    B, D_IN, D_OUT = 8, 32, 2
    STD = 0.1

    key = jax.random.PRNGKey(0)
    k_h, k_w, k_b = jax.random.split(key, 3)

    h_t = jax.random.normal(k_h, (B, D_IN), dtype=jnp.float32)

    # Deterministic nn.Linear-style init: U(-1/sqrt(D_IN), 1/sqrt(D_IN)).
    bound = 1.0 / (D_IN ** 0.5)
    weight = jax.random.uniform(k_w, (D_OUT, D_IN), minval=-bound, maxval=bound,
                                dtype=jnp.float32)
    bias = jax.random.uniform(k_b, (D_OUT,), minval=-bound, maxval=bound,
                              dtype=jnp.float32)

    w_p, b_p = prepare_location_params(weight, bias)   # one-time prep

    # --- Eval mode: l_t = clamp(mean, -1, 1) == mean ------------------------
    mean, l_t = location_network_forward(h_t, w_p, b_p, std=STD, training=False)
    jax.block_until_ready((mean, l_t))

    mean_ref = jnp.tanh(h_t @ weight.T + bias)
    lt_ref = jnp.clip(mean_ref, -1.0, 1.0)
    assert jnp.allclose(mean, mean_ref, atol=1e-5), "eval mean mismatch"
    assert jnp.allclose(l_t, lt_ref, atol=1e-5), "eval l_t mismatch"

    # --- Training mode: l_t = clamp(mean + std * N(0,1), -1, 1) -------------
    train_key = jax.random.PRNGKey(42)
    mean_tr, l_t_tr = location_network_forward(h_t, w_p, b_p, std=STD,
                                               training=True, rng=train_key)
    jax.block_until_ready((mean_tr, l_t_tr))

    noise_ref = jax.random.normal(train_key, (B, D_OUT), dtype=jnp.float32)
    lt_tr_ref = jnp.clip(mean_ref + STD * noise_ref, -1.0, 1.0)
    assert jnp.allclose(mean_tr, mean_ref, atol=1e-5), "training mean mismatch"
    assert jnp.allclose(l_t_tr, lt_tr_ref, atol=1e-5), "training l_t mismatch"
    assert bool(jnp.all(l_t_tr <= 1.0)) and bool(jnp.all(l_t_tr >= -1.0)), "clamp failed"

    print("KERNEL_OK")
</pallas_src>

<mosaic_0001>
module attributes {stable_mosaic.version = 11 : i64} {
  func.func @_loc_eval_kernel(%arg0: i32, %arg1: memref<8x32xf32, #tpu.memory_space<vmem>>, %arg2: memref<2x32xf32, #tpu.memory_space<vmem>>, %arg3: memref<1x2xf32, #tpu.memory_space<vmem>>, %arg4: memref<8x2xf32, #tpu.memory_space<vmem>>) attributes {dimension_semantics = [#tpu.dimension_semantics<parallel>], iteration_bounds = array<i64: 1>, scalar_prefetch = 0 : i64, scratch_operands = 0 : i64, tpu.core_type = #tpu.core_type<tc>, window_params = [{transform_indices = @transform_0, window_bounds = array<i64: 8, 32>}, {pipeline_mode = #tpu.pipeline_mode<synchronous>, transform_indices = @transform_1, window_bounds = array<i64: 2, 32>}, {pipeline_mode = #tpu.pipeline_mode<synchronous>, transform_indices = @transform_2, window_bounds = array<i64: 1, 2>}, {transform_indices = @transform_3, window_bounds = array<i64: 8, 2>}]} {
    %c0 = arith.constant 0 : index
    %c0_0 = arith.constant 0 : index
    %0 = vector.load %arg1[%c0, %c0_0] : memref<8x32xf32, #tpu.memory_space<vmem>>, vector<8x32xf32>
    %c0_1 = arith.constant 0 : index
    %c0_2 = arith.constant 0 : index
    %1 = vector.load %arg2[%c0_1, %c0_2] : memref<2x32xf32, #tpu.memory_space<vmem>>, vector<2x32xf32>
    %cst = arith.constant dense<0.000000e+00> : vector<8x2xf32>
    %2 = tpu.matmul %0, %1, %cst {dimension_numbers = #tpu.dot_dimension_numbers<[1], [1], [0], [0], [0, 0, 1, 0], [], []>} : vector<8x32xf32>, vector<2x32xf32>, vector<8x2xf32> -> vector<8x2xf32>
    %c0_3 = arith.constant 0 : index
    %c0_4 = arith.constant 0 : index
    %3 = vector.load %arg3[%c0_3, %c0_4] : memref<1x2xf32, #tpu.memory_space<vmem>>, vector<1x2xf32>
    %4 = vector.broadcast %3 : vector<1x2xf32> to vector<8x2xf32>
    %5 = arith.addf %2, %4 : vector<8x2xf32>
    %6 = math.tanh %5 : vector<8x2xf32>
    %c0_5 = arith.constant 0 : index
    %c0_6 = arith.constant 0 : index
    %7 = vector.load %arg4[%c0_5, %c0_6] : memref<8x2xf32, #tpu.memory_space<vmem>>, vector<8x2xf32>
    tpu.vector_store %arg4[%c0_5, %c0_6], %6 {strides = array<i32>} : memref<8x2xf32, #tpu.memory_space<vmem>>, vector<8x2xf32>,
    return
  }
  func.func @transform_0(%arg0: i32) -> (i32, i32) {
    %c0_i32 = arith.constant 0 : i32
    %c0_i32_0 = arith.constant 0 : i32
    return %arg0, %c0_i32 : i32, i32
  }
  func.func @transform_1(%arg0: i32) -> (i32, i32) {
    %c0_i32 = arith.constant 0 : i32
    %c0_i32_0 = arith.constant 0 : i32
    %c0_i32_1 = arith.constant 0 : i32
    return %c0_i32, %c0_i32_0 : i32, i32
  }
  func.func @transform_2(%arg0: i32) -> (i32, i32) {
    %c0_i32 = arith.constant 0 : i32
    %c0_i32_0 = arith.constant 0 : i32
    %c0_i32_1 = arith.constant 0 : i32
    return %c0_i32, %c0_i32_0 : i32, i32
  }
  func.func @transform_3(%arg0: i32) -> (i32, i32) {
    %c0_i32 = arith.constant 0 : i32
    %c0_i32_0 = arith.constant 0 : i32
    return %arg0, %c0_i32 : i32, i32
  }
}

</mosaic_0001>

<llo_original>
// kernel: tpu_custom_call.1
$region0: #{tpu_custom_call.1}
  #allocation0 [shape = 'u32[]', space=smem, size = 0x4, offset = 0x4, fixed_abs, tag = 'smem constant byte address 0x4 - core index']
  #allocation1 [shape = 'u32[144,128]{1,0:T(1,128)}', space=vmem, size = 0x12000, scoped, tag = 'internal scratch']
  %s0 = inlined_call_operand.hbm [shape: f32[8,32], index: 0, kind: input, shape index: {}]
  %s1 = inlined_call_operand.vmem [shape: f32[2,32], index: 1, kind: input, shape index: {}]
  %s2 = inlined_call_operand.vmem [shape: f32[1,2], index: 2, kind: input, shape index: {}]
  %s3 = inlined_call_operand.vmem [shape: f32[8,2], index: 3, kind: output, shape index: {}]
  %s4 = sld [smem:[#allocation0]]
  $region26: #{tpu_custom_call.1} parent=0
    _
  %s6 = ssub.s32 1, %s4
  %s7 = scalar_select 0, %s6, %s4
  $region1: #{tpu_custom_call.1} parent=0
    #allocation2 [shape = 'u8[4096]{0}', space=vmem, size = 0x1000, scoped, tag = 'input window, operand 0, single buffered']
    #allocation3 [shape = 's32[1]{0}', space=sflag, size = 0x4, scoped, tag = 'scoped memory for tpu_custom_call.1']
    %8 = vsyncpa [#allocation3], 0
    // Predicated region
    $region2: #{tpu_custom_call.1} parent=1 // pred_check
      _
    $region3: #{tpu_custom_call.1} parent=1 // pred_check_branch
      %10 = sbr.rel (0) target = $region5
    $region4: #{tpu_custom_call.1} parent=1 // pred_region
      %s12 = ssub.s32 128, 128
      %13 = vsyncadd [#allocation3], %s12
      %s15 = sshll.u32 [#allocation2], 4
      %s16 = int_to_ptr.vmem [resolvable:$true] %s15
      %18 = dma.hbm_to_vmem [thread:$0]  %s0, 128, %s16, [#allocation3]
    $region5: #{tpu_custom_call.1} parent=1 // pred_fallthru
      _
    // Predicated region
    $region6: #{tpu_custom_call.1} parent=1 // pred_check
      _
    $region7: #{tpu_custom_call.1} parent=1 // pred_check_branch
      %20 = sbr.rel (0) target = $region9
    $region8: #{tpu_custom_call.1} parent=1 // pred_region
      _
    $region9: #{tpu_custom_call.1} parent=1 // pred_fallthru
      _
    // Predicated region
    $region10: #{tpu_custom_call.1} parent=1 // pred_check
      _
    $region11: #{tpu_custom_call.1} parent=1 // pred_check_branch
      %22 = sbr.rel (0) target = $region13
    $region12: #{tpu_custom_call.1} parent=1 // pred_region
      _
    $region13: #{tpu_custom_call.1} parent=1 // pred_fallthru
      _
    // Predicated region
    $region14: #{tpu_custom_call.1} parent=1 // pred_check
      _
    $region15: #{tpu_custom_call.1} parent=1 // pred_check_branch
      %24 = sbr.rel (0) target = $region17
    $region16: #{tpu_custom_call.1} parent=1 // pred_region
      %25 = dma.done [#allocation3], 128
    $region17: #{tpu_custom_call.1} parent=1 // pred_fallthru
      _
    %v26 = vld [vmem:[#allocation2] sm:$0xff]
    %v27 = vld [vmem:[%s1] sm:$0x3]
    %v28 = vld [vmem:[%s2] sm:$0x1]
    %v30 = vlaneseq
    %v31 = vshrl.u32 %v30, 7
    %v32 = vsub.s32 0, %v31
    %v33 = vrot.slane %v28, %v32
    %vm35 = vcmask 261120
    %v37 = vsel %vm35, %v26, 0
    %v40 = vsel %vm35, %v27, 0
    %42 = vmatprep.subr.mxu0 0.0
    %43 = vmatpush1.xpose.msra.mxu0 %v40
    %44 = vmatprep.subr.mxu0 0.0
    %45 = vmatpush1.xpose.msra.mxu0 0.0
    %46 = vmatprep.subr.mxu0 0.0
    %47 = vmatpush1.xpose.msra.mxu0 0.0
    %48 = vmatprep.subr.mxu0 0.0
    %49 = vmatpush1.xpose.msra.mxu0 0.0
    %50 = vmatprep.subr.mxu0 0.0
    %51 = vmatpush1.xpose.msra.mxu0 0.0
    %52 = vmatprep.subr.mxu0 0.0
    %53 = vmatpush1.xpose.msra.mxu0 0.0
    %54 = vmatprep.subr.mxu0 0.0
    %55 = vmatpush1.xpose.msra.mxu0 0.0
    %56 = vmatprep.subr.mxu0 0.0
    %57 = vmatpush1.xpose.msra.mxu0 0.0
    %58 = vmatprep.subr.mxu0 0.0
    %59 = vmatpush1.xpose.msra.mxu0 0.0
    %60 = vmatprep.subr.mxu0 0.0
    %61 = vmatpush1.xpose.msra.mxu0 0.0
    %62 = vmatprep.subr.mxu0 0.0
    %63 = vmatpush1.xpose.msra.mxu0 0.0
    %64 = vmatprep.subr.mxu0 0.0
    %65 = vmatpush1.xpose.msra.mxu0 0.0
    %66 = vmatprep.subr.mxu0 0.0
    %67 = vmatpush1.xpose.msra.mxu0 0.0
    %68 = vmatprep.subr.mxu0 0.0
    %69 = vmatpush1.xpose.msra.mxu0 0.0
    %70 = vmatprep.subr.mxu0 0.0
    %71 = vmatpush1.xpose.msra.mxu0 0.0
    %72 = vmatprep.subr.mxu0 0.0
    %73 = vmatpush1.xpose.msra.mxu0 0.0
    %74 = vmatprep.subr.mxu0 0.0
    %75 = vmatpush1.xpose.msra.mxu0 0.0
    %76 = vmatprep.subr.mxu0 0.0
    %77 = vmatpush1.xpose.msra.mxu0 0.0
    %78 = vmatprep.subr.mxu0 0.0
    %79 = vmatpush1.xpose.msra.mxu0 0.0
    %80 = vmatprep.subr.mxu0 0.0
    %81 = vmatpush1.xpose.msra.mxu0 0.0
    %82 = vmatprep.subr.mxu0 0.0
    %83 = vmatpush1.xpose.msra.mxu0 0.0
    %84 = vmatprep.subr.mxu0 0.0
    %85 = vmatpush1.xpose.msra.mxu0 0.0
    %86 = vmatprep.subr.mxu0 0.0
    %87 = vmatpush1.xpose.msra.mxu0 0.0
    %88 = vmatprep.subr.mxu0 0.0
    %89 = vmatpush1.xpose.msra.mxu0 0.0
    %90 = vmatprep.subr.mxu0 0.0
    %91 = vmatpush1.xpose.msra.mxu0 0.0
    %92 = vmatprep.subr.mxu0 0.0
    %93 = vmatpush1.xpose.msra.mxu0 0.0
    %94 = vmatprep.subr.mxu0 0.0
    %95 = vmatpush1.xpose.msra.mxu0 0.0
    %96 = vmatprep.subr.mxu0 0.0
    %97 = vmatpush1.xpose.msra.mxu0 0.0
    %98 = vmatprep.subr.mxu0 0.0
    %99 = vmatpush1.xpose.msra.mxu0 0.0
    %100 = vmatprep.subr.mxu0 0.0
    %101 = vmatpush1.xpose.msra.mxu0 0.0
    %102 = vmatprep.subr.mxu0 0.0
    %103 = vmatpush1.xpose.msra.mxu0 0.0
    %104 = vmatprep.subr.mxu0 0.0
    %105 = vmatpush1.xpose.msra.mxu0 0.0
    %106 = vmatprep.mubr.f32.mxu0 0.0
    %107 = vmatmul.mubr.f32.gmra.mrb[0].mxu0 %v37
    %v108 = vpop.f32.mrb[0].mxu0
    %v109 = vadd.f32 %v33, %v108
    %v110 = vpop.f32.mrb[0].mxu0
    %111 = vdwg.mxu0
    %v112 = vtanh.pop %v109
    %vm113 = vcmask 15360
    %114 = vst.msk [vmem:[%s3] sm:$0xff] %vm113, %v112
    // Predicated region
    $region18: #{tpu_custom_call.1} parent=1 // pred_check
      _
    $region19: #{tpu_custom_call.1} parent=1 // pred_check_branch
      %116 = sbr.rel (0) target = $region21
    $region20: #{tpu_custom_call.1} parent=1 // pred_region
      _
    $region21: #{tpu_custom_call.1} parent=1 // pred_fallthru
      _
    // Predicated region
    $region22: #{tpu_custom_call.1} parent=1 // pred_check
      _
    $region23: #{tpu_custom_call.1} parent=1 // pred_check_branch
      %118 = sbr.rel (0) target = $region25
    $region24: #{tpu_custom_call.1} parent=1 // pred_region
      _
    $region25: #{tpu_custom_call.1} parent=1 // pred_fallthru
      _
    %119 = vsyncpa [#allocation3], 1

</llo_original>
